<compile_context>
chip_gen: v6e
topology: v6e:2x2x1
jax: 0.10.0
libtpu: 0.0.40
codegen_flags: <defaults>
</compile_context>

<pallas_src>
import functools

import jax
import jax.numpy as jnp
from jax.experimental import pallas as pl
from jax.experimental.pallas import tpu as pltpu


def _round_up(x, m):
    return (x + m - 1) // m * m


def _pick_tile(total, max_tile, align):
    """Largest multiple of `align` that divides `total` and is <= max_tile."""
    best = align
    t = align
    limit = min(total, max(max_tile, align))
    while t <= limit:
        if total % t == 0:
            best = t
        t += align
    return best


# ----------------------------------------------------------------------------
# Fused kernel: one (row-tile, hidden-tile) grid step of
#   ReLU( ReLU( x @ (w1*s1) + t1 ) @ (w2*s2) + t2 )
# BN scales are pre-folded into the weights; only shifts stay in the epilogue.
# ----------------------------------------------------------------------------
def _ffn_kernel(x_ref, w1_ref, t1_ref, w2_ref, t2_ref, o_ref, acc_ref):
    """x_ref  : [TM, Cp]  channels-last rows (lane-dense, B*H*W flattened)
    w1_ref : [Cp, TH]  scale-folded conv1 weight slice
    t1_ref : [1,  TH]  BN1 shift slice
    w2_ref : [TH, Cp]  scale-folded conv2 weight slice
    t2_ref : [1,  Cp]  BN2 shift
    o_ref  : [TM, Cp]  output rows
    acc_ref: [TM, Cp]  f32 accumulator across hidden tiles
    """
    kh = pl.program_id(1)

    @pl.when(kh == 0)
    def _():
        acc_ref[...] = jnp.zeros_like(acc_ref)

    h = jnp.dot(x_ref[...], w1_ref[...], preferred_element_type=jnp.float32)
    h = jnp.maximum(h + t1_ref[...], 0.0)                       # BN1 shift + ReLU (f32)
    acc_ref[...] += jnp.dot(h.astype(w2_ref.dtype), w2_ref[...],
                            preferred_element_type=jnp.float32)

    @pl.when(kh == pl.num_programs(1) - 1)
    def _():
        y = jnp.maximum(acc_ref[...] + t2_ref[...], 0.0)        # BN2 shift + ReLU
        o_ref[...] = y.astype(o_ref.dtype)


def _bn_fold(bn, eps=1e-5):
    # TODO(synk): BatchNorm2d is evaluated with running statistics (eval mode);
    # training-mode batch statistics would need a cross-tile reduction pass.
    s = bn["gamma"] * jax.lax.rsqrt(bn["var"] + eps)
    t = bn["beta"] - bn["mean"] * s
    return s, t


# ----------------------------------------------------------------------------
# NHWC (channels-last) entry point: no boundary transposes.
# ----------------------------------------------------------------------------
def cnn_feed_forward_nhwc(x_nhwc, params, *, row_tile=512, hidden_tile=512,
                          matmul_dtype=jnp.bfloat16, out_dtype=None):
    if out_dtype is None:
        out_dtype = matmul_dtype
    B, H, W, C = x_nhwc.shape
    Hd = params["w1"].shape[1]                      # hidden_dim
    assert params["w1"].shape == (C, Hd) and params["w2"].shape == (Hd, C)

    # ---- batch folded into matmul rows; cast BEFORE any padding copy -------
    M = B * H * W
    x = x_nhwc.reshape(M, C).astype(matmul_dtype)

    # ---- lane-dense channel padding + MXU/sublane-friendly tiles -----------
    Cp = _round_up(C, 128)
    Hp = _round_up(Hd, 128)
    TH = _pick_tile(Hp, hidden_tile, 128)
    row_align = 128                                  # multiple of 8/16/32 sublane packs
    TM = max(row_align, min(_round_up(row_tile, row_align),
                            _round_up(M, row_align)))
    Mp = _round_up(M, TM)
    # v7x megacore: keep >= 2 row tiles so both TensorCores get work.
    if Mp // TM < 2 and TM > row_align:
        TM = max(row_align, TM // 2)
        Mp = _round_up(M, TM)

    # ---- fold BN scale into weights; only shifts go into the kernel --------
    s1, t1 = _bn_fold(params["bn1"])
    s2, t2 = _bn_fold(params["bn2"])
    w1 = (params["w1"] * s1[None, :]).astype(matmul_dtype)
    w2 = (params["w2"] * s2[None, :]).astype(matmul_dtype)

    # ---- pad only when needed (fast path for aligned shapes) ---------------
    x_p = x if (Mp, Cp) == (M, C) else jnp.pad(x, ((0, Mp - M), (0, Cp - C)))
    w1_p = w1 if (Cp, Hp) == (C, Hd) else jnp.pad(w1, ((0, Cp - C), (0, Hp - Hd)))
    w2_p = w2 if (Hp, Cp) == (Hd, C) else jnp.pad(w2, ((0, Hp - Hd), (0, Cp - C)))
    t1_p = jnp.pad(t1.astype(jnp.float32), (0, Hp - Hd)).reshape(1, Hp)
    t2_p = jnp.pad(t2.astype(jnp.float32), (0, Cp - C)).reshape(1, Cp)

    grid = (Mp // TM, Hp // TH)
    in_it = jnp.dtype(matmul_dtype).itemsize
    out_it = jnp.dtype(out_dtype).itemsize

    flops = 4 * Mp * Cp * Hp + 2 * Mp * (Hp + Cp)
    bytes_accessed = (Mp * Cp * in_it + Cp * Hp * in_it + Hp * Cp * in_it
                      + (Hp + Cp) * 4 + Mp * Cp * out_it)

    # VMEM: double-buffered x/out tiles + weight slices, f32 accumulator and
    # the TM x TH f32 intermediate; cap within the v7x 64 MiB budget.
    vmem_bytes = (2 * TM * Cp * in_it + 2 * TM * Cp * out_it
                  + 4 * Cp * TH * in_it + TM * Cp * 4 + TM * TH * 4
                  + 4 * 8 * (Cp + TH) * 4)
    vmem_limit = int(min(max(2 * vmem_bytes, 32 * 1024 * 1024), 64 * 1024 * 1024))

    out_p = pl.pallas_call(
        _ffn_kernel,
        out_shape=jax.ShapeDtypeStruct((Mp, Cp), out_dtype),
        grid=grid,
        in_specs=[
            pl.BlockSpec((TM, Cp), lambda i, k: (i, 0)),   # x rows (resident over k)
            pl.BlockSpec((Cp, TH), lambda i, k: (0, k)),   # w1 slice
            pl.BlockSpec((1, TH), lambda i, k: (0, k)),    # t1 slice
            pl.BlockSpec((TH, Cp), lambda i, k: (k, 0)),   # w2 slice
            pl.BlockSpec((1, Cp), lambda i, k: (0, 0)),    # t2
        ],
        out_specs=pl.BlockSpec((TM, Cp), lambda i, k: (i, 0)),
        scratch_shapes=[pltpu.VMEM((TM, Cp), jnp.float32)],
        compiler_params=pltpu.CompilerParams(
            dimension_semantics=("parallel", "arbitrary"),
            vmem_limit_bytes=vmem_limit),
        cost_estimate=pl.CostEstimate(flops=flops, transcendentals=0,
                                      bytes_accessed=bytes_accessed),
    )(x_p, w1_p, t1_p, w2_p, t2_p)

    return out_p[:M, :C].reshape(B, H, W, C)


# ----------------------------------------------------------------------------
# NCHW wrapper -- matches CNNFeedForward.forward.  Exactly one transpose on
# each side; NHWC callers should use cnn_feed_forward_nhwc directly.
# ----------------------------------------------------------------------------
def cnn_feed_forward(x_nchw, params, **kwargs):
    x = jnp.transpose(x_nchw, (0, 2, 3, 1))
    out = cnn_feed_forward_nhwc(x, params, **kwargs)
    return jnp.transpose(out, (0, 3, 1, 2))


# ----------------------------------------------------------------------------
# Pure-JAX reference (same inference-mode BN folding) for correctness check.
# ----------------------------------------------------------------------------
def cnn_feed_forward_ref(x_nchw, params):
    s1, t1 = _bn_fold(params["bn1"])
    s2, t2 = _bn_fold(params["bn2"])
    x = jnp.transpose(x_nchw, (0, 2, 3, 1))
    h = jnp.maximum(jnp.einsum("bhwc,cd->bhwd", x, params["w1"]) * s1 + t1, 0.0)
    y = jnp.maximum(jnp.einsum("bhwd,dc->bhwc", h, params["w2"]) * s2 + t2, 0.0)
    return jnp.transpose(y, (0, 3, 1, 2))


def _init_params(key, dim, hidden_dim):
    kw1, kw2, k1, k2, k3, k4, k5, k6, k7, k8 = jax.random.split(key, 10)

    def bn(kg, kb, km, kv, n):
        return {
            "gamma": 1.0 + 0.1 * jax.random.normal(kg, (n,), jnp.float32),
            "beta": 0.1 * jax.random.normal(kb, (n,), jnp.float32),
            "mean": 0.1 * jax.random.normal(km, (n,), jnp.float32),
            "var": jax.random.uniform(kv, (n,), jnp.float32, 0.5, 1.5),
        }

    return {
        # conv1.weight[:, :, 0, 0].T and conv2.weight[:, :, 0, 0].T in matmul form
        "w1": (dim ** -0.5) * jax.random.normal(kw1, (dim, hidden_dim), jnp.float32),
        "w2": (hidden_dim ** -0.5) * jax.random.normal(kw2, (hidden_dim, dim), jnp.float32),
        "bn1": bn(k1, k2, k3, k4, hidden_dim),
        "bn2": bn(k5, k6, k7, k8, dim),
    }


if __name__ == "__main__":
    key = jax.random.PRNGKey(0)
    kx, kp = jax.random.split(key)

    B, dim, hidden_dim, Hs, Ws = 2, 64, 128, 16, 16
    x = jax.random.normal(kx, (B, dim, Hs, Ws), jnp.float32)
    params = _init_params(kp, dim, hidden_dim)

    ref = cnn_feed_forward_ref(x, params)

    # Default (performance) path: bf16 MXU operands + bf16 writeback.
    fwd_bf16 = jax.jit(cnn_feed_forward)
    out_bf16 = jax.block_until_ready(fwd_bf16(x, params))
    assert out_bf16.shape == (B, dim, Hs, Ws)
    assert out_bf16.dtype == jnp.bfloat16
    out_bf16_f32 = out_bf16.astype(jnp.float32)
    assert bool(jnp.all(jnp.isfinite(out_bf16_f32)))
    assert bool(jnp.allclose(out_bf16_f32, ref, rtol=5e-2, atol=5e-2))

    # Full-precision path for a tighter numerical check of the kernel itself.
    fwd_f32 = jax.jit(functools.partial(cnn_feed_forward,
                                        matmul_dtype=jnp.float32,
                                        out_dtype=jnp.float32))
    out_f32 = jax.block_until_ready(fwd_f32(x, params))
    assert out_f32.shape == (B, dim, Hs, Ws)
    assert bool(jnp.allclose(out_f32, ref, rtol=2e-2, atol=2e-2))

    print("KERNEL_OK")
</pallas_src>

<mosaic_0001>
module attributes {stable_mosaic.version = 11 : i64} {
  func.func @_ffn_kernel(%arg0: i32, %arg1: i32, %arg2: memref<256x128xbf16, #tpu.memory_space<vmem>>, %arg3: memref<128x128xbf16, #tpu.memory_space<vmem>>, %arg4: memref<1x128xf32, #tpu.memory_space<vmem>>, %arg5: memref<128x128xbf16, #tpu.memory_space<vmem>>, %arg6: memref<1x128xf32, #tpu.memory_space<vmem>>, %arg7: memref<256x128xbf16, #tpu.memory_space<vmem>>, %arg8: memref<256x128xf32, #tpu.memory_space<vmem>>) attributes {dimension_semantics = [#tpu.dimension_semantics<parallel>, #tpu.dimension_semantics<arbitrary>], iteration_bounds = array<i64: 2, 1>, scalar_prefetch = 0 : i64, scratch_operands = 1 : i64, tpu.core_type = #tpu.core_type<tc>, window_params = [{transform_indices = @transform_0, window_bounds = array<i64: 256, 128>}, {transform_indices = @transform_1, window_bounds = array<i64: 128, 128>}, {transform_indices = @transform_2, window_bounds = array<i64: 1, 128>}, {transform_indices = @transform_3, window_bounds = array<i64: 128, 128>}, {pipeline_mode = #tpu.pipeline_mode<synchronous>, transform_indices = @transform_4, window_bounds = array<i64: 1, 128>}, {transform_indices = @transform_5, window_bounds = array<i64: 256, 128>}]} {
    %c0_i32 = arith.constant 0 : i32
    %0 = arith.cmpi eq, %arg1, %c0_i32 : i32
    %1 = arith.extui %0 : i1 to i32
    %c0_i32_0 = arith.constant 0 : i32
    %2 = arith.cmpi ne, %1, %c0_i32_0 : i32
    scf.if %2 {
      %cst_16 = arith.constant 0.000000e+00 : f32
      %20 = vector.broadcast %cst_16 : f32 to vector<256x128xf32>
      %c0_17 = arith.constant 0 : index
      %c0_18 = arith.constant 0 : index
      %21 = vector.load %arg8[%c0_17, %c0_18] : memref<256x128xf32, #tpu.memory_space<vmem>>, vector<256x128xf32>
      tpu.vector_store %arg8[%c0_17, %c0_18], %20 {strides = array<i32>} : memref<256x128xf32, #tpu.memory_space<vmem>>, vector<256x128xf32>,
    } else {
    }
    %c0 = arith.constant 0 : index
    %c0_1 = arith.constant 0 : index
    %3 = vector.load %arg2[%c0, %c0_1] : memref<256x128xbf16, #tpu.memory_space<vmem>>, vector<256x128xbf16>
    %c0_2 = arith.constant 0 : index
    %c0_3 = arith.constant 0 : index
    %4 = vector.load %arg3[%c0_2, %c0_3] : memref<128x128xbf16, #tpu.memory_space<vmem>>, vector<128x128xbf16>
    %cst = arith.constant dense<0.000000e+00> : vector<256x128xf32>
    %5 = tpu.matmul %3, %4, %cst {dimension_numbers = #tpu.dot_dimension_numbers<[1], [0], [0], [1], [0, 0, 1, 1], [], []>} : vector<256x128xbf16>, vector<128x128xbf16>, vector<256x128xf32> -> vector<256x128xf32>
    %c0_4 = arith.constant 0 : index
    %c0_5 = arith.constant 0 : index
    %6 = vector.load %arg4[%c0_4, %c0_5] : memref<1x128xf32, #tpu.memory_space<vmem>>, vector<1x128xf32>
    %7 = vector.broadcast %6 : vector<1x128xf32> to vector<256x128xf32>
    %8 = arith.addf %5, %7 : vector<256x128xf32>
    %cst_6 = arith.constant 0.000000e+00 : f32
    %9 = vector.broadcast %cst_6 : f32 to vector<256x128xf32>
    %10 = arith.maximumf %8, %9 : vector<256x128xf32>
    %c0_7 = arith.constant 0 : index
    %c0_8 = arith.constant 0 : index
    %11 = vector.load %arg8[%c0_7, %c0_8] : memref<256x128xf32, #tpu.memory_space<vmem>>, vector<256x128xf32>
    %12 = arith.truncf %10 : vector<256x128xf32> to vector<256x128xbf16>
    %c0_9 = arith.constant 0 : index
    %c0_10 = arith.constant 0 : index
    %13 = vector.load %arg5[%c0_9, %c0_10] : memref<128x128xbf16, #tpu.memory_space<vmem>>, vector<128x128xbf16>
    %cst_11 = arith.constant dense<0.000000e+00> : vector<256x128xf32>
    %14 = tpu.matmul %12, %13, %cst_11 {dimension_numbers = #tpu.dot_dimension_numbers<[1], [0], [0], [1], [0, 0, 1, 1], [], []>} : vector<256x128xbf16>, vector<128x128xbf16>, vector<256x128xf32> -> vector<256x128xf32>
    %15 = arith.addf %11, %14 : vector<256x128xf32>
    %c0_12 = arith.constant 0 : index
    %c0_13 = arith.constant 0 : index
    %16 = vector.load %arg8[%c0_12, %c0_13] : memref<256x128xf32, #tpu.memory_space<vmem>>, vector<256x128xf32>
    tpu.vector_store %arg8[%c0_12, %c0_13], %15 {strides = array<i32>} : memref<256x128xf32, #tpu.memory_space<vmem>>, vector<256x128xf32>,
    %c0_i32_14 = arith.constant 0 : i32
    %17 = arith.cmpi eq, %arg1, %c0_i32_14 : i32
    %18 = arith.extui %17 : i1 to i32
    %c0_i32_15 = arith.constant 0 : i32
    %19 = arith.cmpi ne, %18, %c0_i32_15 : i32
    scf.if %19 {
      %c0_16 = arith.constant 0 : index
      %c0_17 = arith.constant 0 : index
      %20 = vector.load %arg8[%c0_16, %c0_17] : memref<256x128xf32, #tpu.memory_space<vmem>>, vector<256x128xf32>
      %c0_18 = arith.constant 0 : index
      %c0_19 = arith.constant 0 : index
      %21 = vector.load %arg6[%c0_18, %c0_19] : memref<1x128xf32, #tpu.memory_space<vmem>>, vector<1x128xf32>
      %22 = vector.broadcast %21 : vector<1x128xf32> to vector<256x128xf32>
      %23 = arith.addf %20, %22 : vector<256x128xf32>
      %cst_20 = arith.constant 0.000000e+00 : f32
      %24 = vector.broadcast %cst_20 : f32 to vector<256x128xf32>
      %25 = arith.maximumf %23, %24 : vector<256x128xf32>
      %26 = arith.truncf %25 : vector<256x128xf32> to vector<256x128xbf16>
      %c0_21 = arith.constant 0 : index
      %c0_22 = arith.constant 0 : index
      %27 = vector.load %arg7[%c0_21, %c0_22] : memref<256x128xbf16, #tpu.memory_space<vmem>>, vector<256x128xbf16>
      tpu.vector_store %arg7[%c0_21, %c0_22], %26 {strides = array<i32>} : memref<256x128xbf16, #tpu.memory_space<vmem>>, vector<256x128xbf16>,
    } else {
    }
    return
  }
  func.func @transform_0(%arg0: i32, %arg1: i32) -> (i32, i32) {
    %c0_i32 = arith.constant 0 : i32
    %c0_i32_0 = arith.constant 0 : i32
    return %arg0, %c0_i32 : i32, i32
  }
  func.func @transform_1(%arg0: i32, %arg1: i32) -> (i32, i32) {
    %c0_i32 = arith.constant 0 : i32
    %c0_i32_0 = arith.constant 0 : i32
    return %c0_i32, %arg1 : i32, i32
  }
  func.func @transform_2(%arg0: i32, %arg1: i32) -> (i32, i32) {
    %c0_i32 = arith.constant 0 : i32
    %c0_i32_0 = arith.constant 0 : i32
    return %c0_i32, %arg1 : i32, i32
  }
  func.func @transform_3(%arg0: i32, %arg1: i32) -> (i32, i32) {
    %c0_i32 = arith.constant 0 : i32
    %c0_i32_0 = arith.constant 0 : i32
    return %arg1, %c0_i32 : i32, i32
  }
  func.func @transform_4(%arg0: i32, %arg1: i32) -> (i32, i32) {
    %c0_i32 = arith.constant 0 : i32
    %c0_i32_0 = arith.constant 0 : i32
    %c0_i32_1 = arith.constant 0 : i32
    return %c0_i32, %c0_i32_0 : i32, i32
  }
  func.func @transform_5(%arg0: i32, %arg1: i32) -> (i32, i32) {
    %c0_i32 = arith.constant 0 : i32
    %c0_i32_0 = arith.constant 0 : i32
    return %arg0, %c0_i32 : i32, i32
  }
}

</mosaic_0001>

<llo_original>
// kernel: cnn_feed_forward.1
$region0: #{cnn_feed_forward.1}
  #allocation0 [shape = 'u32[]', space=smem, size = 0x4, offset = 0x4, fixed_abs, tag = 'smem constant byte address 0x4 - core index']
  #allocation1 [shape = 'u32[144,128]{1,0:T(1,128)}', space=vmem, size = 0x12000, scoped, tag = 'internal scratch']
  #allocation2 [shape = 'f32[256,128]{1,0:T(8,128)}', space=vmem, size = 0x20000, scoped, tag = 'scratch operand']
  %s0 = inlined_call_operand.vmem [shape: bf16[512,128], index: 0, kind: input, shape index: {}]
  %s1 = inlined_call_operand.vmem [shape: bf16[128,128], index: 1, kind: input, shape index: {}]
  %s2 = inlined_call_operand.vmem [shape: f32[1,128], index: 2, kind: input, shape index: {}]
  %s3 = inlined_call_operand.vmem [shape: bf16[128,128], index: 3, kind: input, shape index: {}]
  %s4 = inlined_call_operand.vmem [shape: f32[1,128], index: 4, kind: input, shape index: {}]
  %s5 = inlined_call_operand.hbm [shape: bf16[512,128], index: 5, kind: output, shape index: {}]
  %s6 = sld [smem:[#allocation0]]
  $region61: #{cnn_feed_forward.1} parent=0
    _
  %s8 = ssub.s32 1, %s6
  %s9 = scalar_select 0, %s8, %s6
  $region1: #{cnn_feed_forward.1} parent=0
    #allocation3 [shape = 'u8[131072]{0}', space=vmem, size = 0x20000, scoped, tag = 'output window, operand 0']
    #allocation4 [shape = 's32[2]{0}', space=sflag, size = 0x8, scoped, tag = 'scoped memory for cnn_feed_forward.1']
    %10 = vsyncpa [#allocation4], 0
    %s11 = scalar_lea.sflag [#allocation4], 1
    %12 = vsyncpa %s11, 0
    loop: start=0, step=1, limit=4
    $region2: #{cnn_feed_forward.1} parent=1 // loop_pre_header
      _
    $region3: #{cnn_feed_forward.1} parent=1 // loop_header
      %s14 = sphi 0, %s18
      %p15 = scmp.ge.s32.totalorder %s14, 4
      %s21 = sphi 0, %s33
      %s22 = sphi 0, %s29
      %s23 = sphi 0, %s21
      %s24 = sphi 0, %s22
      %s25 = sphi 0, %s23
      %s26 = sphi 0, %s24
      %s36 = sphi 0, %s38
      %s39 = sphi 0, %s36
      %s40 = sphi 0, %s39
      %s56 = sphi 0, %s40
      %s62 = sphi 0, %s64
      %s65 = sphi 0, %s62
      %s66 = sphi 0, %s65
      %s82 = sphi 0, %s66
      %s88 = sphi 0, %s90
      %s91 = sphi 0, %s88
      %s92 = sphi 0, %s91
      %s108 = sphi 0, %s92
      %s114 = sphi 0, %s116
      %s117 = sphi 0, %s114
      %s118 = sphi 0, %s117
      %s134 = sphi 0, %s118
      %s138 = sphi 0, %s138
      %s140 = sphi 0, %s138
      %s141 = sphi 0, %s140
      %s155 = sphi 0, %s141
      %s161 = sphi 0, %s163
      %s164 = sphi 0, %s161
      %s165 = sphi 0, %s164
      %s181 = sphi 0, %s165
    $region4: #{cnn_feed_forward.1} parent=1 // loop_header_branch
      %17 = sbr.rel (%p15) target = $region8
    $region5: #{cnn_feed_forward.1} parent=1 // loop_body
      %s19 = ssub.s32 %s14, 1
      %s20 = ssub.s32 %s14, 2
      %s27 = sadd.s32 1, %s22
      %p28 = scmp.ge.s32.totalorder %s27, 1
      %s29 = scalar_select %p28, 0, %s27
      %s30 = sadd.s32 1, %s21
      %s31 = scalar_select %p28, %s30, %s21
      %p32 = scmp.ge.s32.totalorder %s31, 2
      %s33 = scalar_select %p32, 0, %s31
      %s34 = ssub.s32 %s21, %s33
      %p35 = scmp.eq.s32.totalorder %s34, 0
      %s37 = sadd.s32 %s36, 1
      %s38 = scalar_select %p35, %s36, %s37
      %p41 = pneg %p35
      %p42 = scmp.eq.s32.totalorder %s14, 1
      %p43 = por %p41, %p42
      %p44 = scmp.ne.s32.totalorder %s36, %s39
      %p45 = scmp.eq.s32.totalorder %s14, 0
      %p46 = por %p44, %p45
      %p47 = scmp.ne.s32.totalorder %s36, %s39
      %p48 = scmp.eq.s32.totalorder %s19, 1
      %p49 = por %p47, %p48
      %p50 = scmp.ne.s32.totalorder %s39, %s40
      %p51 = scmp.eq.s32.totalorder %s19, 0
      %p52 = por %p50, %p51
      %p53 = scmp.ne.s32.totalorder %s39, %s40
      %p54 = scmp.eq.s32.totalorder %s20, 1
      %p55 = por %p53, %p54
      %p57 = scmp.ne.s32.totalorder %s40, %s56
      %p58 = scmp.eq.s32.totalorder %s20, 0
      %p59 = por %p57, %p58
      %s60 = ssub.s32 %s22, %s29
      %p61 = scmp.eq.s32.totalorder %s60, 0
      %s63 = sadd.s32 %s62, 1
      %s64 = scalar_select %p61, %s62, %s63
      %p67 = pneg %p61
      %p68 = scmp.eq.s32.totalorder %s14, 1
      %p69 = por %p67, %p68
      %p70 = scmp.ne.s32.totalorder %s62, %s65
      %p71 = scmp.eq.s32.totalorder %s14, 0
      %p72 = por %p70, %p71
      %p73 = scmp.ne.s32.totalorder %s62, %s65
      %p74 = scmp.eq.s32.totalorder %s19, 1
      %p75 = por %p73, %p74
      %p76 = scmp.ne.s32.totalorder %s65, %s66
      %p77 = scmp.eq.s32.totalorder %s19, 0
      %p78 = por %p76, %p77
      %p79 = scmp.ne.s32.totalorder %s65, %s66
      %p80 = scmp.eq.s32.totalorder %s20, 1
      %p81 = por %p79, %p80
      %p83 = scmp.ne.s32.totalorder %s66, %s82
      %p84 = scmp.eq.s32.totalorder %s20, 0
      %p85 = por %p83, %p84
      %s86 = ssub.s32 %s22, %s29
      %p87 = scmp.eq.s32.totalorder %s86, 0
      %s89 = sadd.s32 %s88, 1
      %s90 = scalar_select %p87, %s88, %s89
      %p93 = pneg %p87
      %p94 = scmp.eq.s32.totalorder %s14, 1
      %p95 = por %p93, %p94
      %p96 = scmp.ne.s32.totalorder %s88, %s91
      %p97 = scmp.eq.s32.totalorder %s14, 0
      %p98 = por %p96, %p97
      %p99 = scmp.ne.s32.totalorder %s88, %s91
      %p100 = scmp.eq.s32.totalorder %s19, 1
      %p101 = por %p99, %p100
      %p102 = scmp.ne.s32.totalorder %s91, %s92
      %p103 = scmp.eq.s32.totalorder %s19, 0
      %p104 = por %p102, %p103
      %p105 = scmp.ne.s32.totalorder %s91, %s92
      %p106 = scmp.eq.s32.totalorder %s20, 1
      %p107 = por %p105, %p106
      %p109 = scmp.ne.s32.totalorder %s92, %s108
      %p110 = scmp.eq.s32.totalorder %s20, 0
      %p111 = por %p109, %p110
      %s112 = ssub.s32 %s22, %s29
      %p113 = scmp.eq.s32.totalorder %s112, 0
      %s115 = sadd.s32 %s114, 1
      %s116 = scalar_select %p113, %s114, %s115
      %p119 = pneg %p113
      %p120 = scmp.eq.s32.totalorder %s14, 1
      %p121 = por %p119, %p120
      %p122 = scmp.ne.s32.totalorder %s114, %s117
      %p123 = scmp.eq.s32.totalorder %s14, 0
      %p124 = por %p122, %p123
      %p125 = scmp.ne.s32.totalorder %s114, %s117
      %p126 = scmp.eq.s32.totalorder %s19, 1
      %p127 = por %p125, %p126
      %p128 = scmp.ne.s32.totalorder %s117, %s118
      %p129 = scmp.eq.s32.totalorder %s19, 0
      %p130 = por %p128, %p129
      %p131 = scmp.ne.s32.totalorder %s117, %s118
      %p132 = scmp.eq.s32.totalorder %s20, 1
      %p133 = por %p131, %p132
      %p135 = scmp.ne.s32.totalorder %s118, %s134
      %p136 = scmp.eq.s32.totalorder %s20, 0
      %p137 = por %p135, %p136
      %s139 = sadd.s32 %s138, 1
      %p142 = scmp.eq.s32.totalorder %s14, 1
      %p143 = scmp.ne.s32.totalorder %s138, %s140
      %p144 = scmp.eq.s32.totalorder %s14, 0
      %p145 = por %p143, %p144
      %p146 = scmp.ne.s32.totalorder %s138, %s140
      %p147 = scmp.eq.s32.totalorder %s19, 1
      %p148 = por %p146, %p147
      %p149 = scmp.ne.s32.totalorder %s140, %s141
      %p150 = scmp.eq.s32.totalorder %s19, 0
      %p151 = por %p149, %p150
      %p152 = scmp.ne.s32.totalorder %s140, %s141
      %p153 = scmp.eq.s32.totalorder %s20, 1
      %p154 = por %p152, %p153
      %p156 = scmp.ne.s32.totalorder %s141, %s155
      %p157 = scmp.eq.s32.totalorder %s20, 0
      %p158 = por %p156, %p157
      %s159 = ssub.s32 %s21, %s33
      %p160 = scmp.eq.s32.totalorder %s159, 0
      %s162 = sadd.s32 %s161, 1
      %s163 = scalar_select %p160, %s161, %s162
      %p166 = pneg %p160
      %p167 = scmp.eq.s32.totalorder %s14, 1
      %p168 = por %p166, %p167
      %p169 = scmp.ne.s32.totalorder %s161, %s164
      %p170 = scmp.eq.s32.totalorder %s14, 0
      %p171 = por %p169, %p170
      %p172 = scmp.ne.s32.totalorder %s161, %s164
      %p173 = scmp.eq.s32.totalorder %s19, 1
      %p174 = por %p172, %p173
      %p175 = scmp.ne.s32.totalorder %s164, %s165
      %p176 = scmp.eq.s32.totalorder %s19, 0
      %p177 = por %p175, %p176
      %p178 = scmp.ne.s32.totalorder %s164, %s165
      %p179 = scmp.eq.s32.totalorder %s20, 1
      %p180 = por %p178, %p179
      %p182 = scmp.ne.s32.totalorder %s165, %s181
      %p183 = scmp.eq.s32.totalorder %s20, 0
      %p184 = por %p182, %p183
      %p185 = scmp.le.s32.totalorder 1, %s14
      %p186 = scmp.lt.s32.totalorder %s14, 3
      %p187 = pnand %p185, %p186
      %p188 = pneg %p187
      // Predicated region
      $region9: #{cnn_feed_forward.1} parent=5 // pred_check
        _
      $region10: #{cnn_feed_forward.1} parent=5 // pred_check_branch
        %190 = sbr.rel (%p187) target = $region12
      $region11: #{cnn_feed_forward.1} parent=5 // pred_region
        %s191 = ssub.s32 %s14, 1
        // Predicated region
        $region13: #{cnn_feed_forward.1} parent=11 // pred_check
          %p192 = pneg %p78
        $region14: #{cnn_feed_forward.1} parent=11 // pred_check_branch
          %194 = sbr.rel (%p192) target = $region16
        $region15: #{cnn_feed_forward.1} parent=11 // pred_region
          %p195 = scmp.lt.s32.totalorder %s24, 0
          %s196 = scalar_select %p195, %s24, 0
          %s197 = smul.addr %s196, 4
          %s198 = scalar_lea.vmem %s1, %s197
        $region16: #{cnn_feed_forward.1} parent=11 // pred_fallthru
          _
        // Predicated region
        $region17: #{cnn_feed_forward.1} parent=11 // pred_check
          %p199 = pneg %p104
        $region18: #{cnn_feed_forward.1} parent=11 // pred_check_branch
          %201 = sbr.rel (%p199) target = $region20
        $region19: #{cnn_feed_forward.1} parent=11 // pred_region
          %p202 = scmp.lt.s32.totalorder %s24, 0
          %s203 = scalar_select %p202, %s24, 0
          %s204 = scalar_lea.vmem %s2, %s203
        $region20: #{cnn_feed_forward.1} parent=11 // pred_fallthru
          _
        // Predicated region
        $region21: #{cnn_feed_forward.1} parent=11 // pred_check
          %p205 = pneg %p130
        $region22: #{cnn_feed_forward.1} parent=11 // pred_check_branch
          %207 = sbr.rel (%p205) target = $region24
        $region23: #{cnn_feed_forward.1} parent=11 // pred_region
          %s208 = smul.u32 16, %s24
          %p209 = scmp.lt.s32.totalorder %s208, 15
          %s210 = scalar_select %p209, %s208, 15
          %s211 = smul.addr %s210, 4
          %s212 = scalar_lea.vmem %s3, %s211
          %s213 = smul.u32 16, %s24
        $region24: #{cnn_feed_forward.1} parent=11 // pred_fallthru
          _
        // Predicated region
        $region25: #{cnn_feed_forward.1} parent=11 // pred_check
          %p214 = pneg %p151
        $region26: #{cnn_feed_forward.1} parent=11 // pred_check_branch
          %216 = sbr.rel (%p214) target = $region28
        $region27: #{cnn_feed_forward.1} parent=11 // pred_region
          _
        $region28: #{cnn_feed_forward.1} parent=11 // pred_fallthru
          _
      $region12: #{cnn_feed_forward.1} parent=5 // pred_fallthru
        _
      %p217 = scmp.lt.s32.totalorder %s14, 2
      // Predicated region
      $region29: #{cnn_feed_forward.1} parent=5 // pred_check
        %p218 = pneg %p217
      $region30: #{cnn_feed_forward.1} parent=5 // pred_check_branch
        %220 = sbr.rel (%p218) target = $region32
      $region31: #{cnn_feed_forward.1} parent=5 // pred_region
        // Predicated region
        $region33: #{cnn_feed_forward.1} parent=31 // pred_check
          %p221 = pneg %p46
        $region34: #{cnn_feed_forward.1} parent=31 // pred_check_branch
          %223 = sbr.rel (%p221) target = $region36
        $region35: #{cnn_feed_forward.1} parent=31 // pred_region
          %s224 = smul.u32 32, %s21
          %p225 = scmp.lt.s32.totalorder %s224, 63
          %s226 = scalar_select %p225, %s224, 63
          %s227 = smul.addr %s226, 4
          %s228 = scalar_lea.vmem %s0, %s227
          %s229 = smul.u32 32, %s21
        $region36: #{cnn_feed_forward.1} parent=31 // pred_fallthru
          _
      $region32: #{cnn_feed_forward.1} parent=5 // pred_fallthru
        _
      %p230 = scmp.le.s32.totalorder 1, %s14
      %p231 = scmp.lt.s32.totalorder %s14, 3
      %p232 = pnand %p230, %p231
      %p233 = pneg %p232
      // Predicated region
      $region37: #{cnn_feed_forward.1} parent=5 // pred_check
        _
      $region38: #{cnn_feed_forward.1} parent=5 // pred_check_branch
        %235 = sbr.rel (%p232) target = $region40
      $region39: #{cnn_feed_forward.1} parent=5 // pred_region
        %s236 = ssub.s32 %s14, 1
        %s237 = smul.u32 32, %s23
        %p238 = scmp.lt.s32.totalorder %s237, 63
        %s239 = scalar_select %p238, %s237, 63
        %s240 = smul.addr %s239, 4
        %s241 = scalar_lea.vmem %s0, %s240
        %p242 = pneg %p52
        %p243 = pneg %p49
        %p244 = scmp.lt.s32.totalorder %s24, 0
        %s245 = scalar_select %p244, %s24, 0
        %s246 = smul.addr %s245, 4
        %s247 = scalar_lea.vmem %s1, %s246
        %p248 = pneg %p78
        %p249 = pneg %p75
        %p250 = scmp.lt.s32.totalorder %s24, 0
        %s251 = scalar_select %p250, %s24, 0
        %s252 = scalar_lea.vmem %s2, %s251
        %p253 = pneg %p104
        %p254 = pneg %p101
        %s255 = smul.u32 16, %s24
        %p256 = scmp.lt.s32.totalorder %s255, 15
        %s257 = scalar_select %p256, %s255, 15
        %s258 = smul.addr %s257, 4
        %s259 = scalar_lea.vmem %s3, %s258
        %p260 = pneg %p130
        %p261 = pneg %p127
        %p262 = pneg %p151
        %p263 = pneg %p148
        %p264 = pneg %p177
        %p265 = pneg %p174
        %s266 = sand.u32 %s164, 1
        %s267 = scalar_lea.sflag [#allocation4], %s266
        %s268 = sand.u32 %s164, 1
        %s269 = smul.addr %s268, 128
        %s270 = scalar_lea.vmem [#allocation3], %s269
        %s271 = smul.u32 32, %s23
        %p272 = scmp.lt.s32.totalorder %s271, 63
        %s273 = scalar_select %p272, %s271, 63
        %s274 = smul.addr %s273, 4
        %s275 = scalar_lea.vmem %s0, %s274
        %s276 = smul.u32 32, %s23
        %p277 = scmp.lt.s32.totalorder %s24, 0
        %s278 = scalar_select %p277, %s24, 0
        %s279 = smul.addr %s278, 4
        %s280 = scalar_lea.vmem %s1, %s279
        %p281 = scmp.lt.s32.totalorder %s24, 0
        %s282 = scalar_select %p281, %s24, 0
        %s283 = scalar_lea.vmem %s2, %s282
        %s284 = smul.u32 16, %s24
        %p285 = scmp.lt.s32.totalorder %s284, 15
        %s286 = scalar_select %p285, %s284, 15
        %s287 = smul.addr %s286, 4
        %s288 = scalar_lea.vmem %s3, %s287
        %s289 = smul.u32 16, %s24
        %s290 = smul.u32 32, %s23
        %p292 = scmp.eq.s32.totalorder %s24, 0
        // Predicated region
        $region41: #{cnn_feed_forward.1} parent=39 // pred_check
          %p293 = pneg %p292
        $region42: #{cnn_feed_forward.1} parent=39 // pred_check_branch
          %295 = sbr.rel (%p293) target = $region44
        $region43: #{cnn_feed_forward.1} parent=39 // pred_region
          %296 = vst [vmem:[#allocation2] sm:$0xff] 0.0
          %297 = vst [vmem:[#allocation2 + $0x8] sm:$0xff] 0.0
          %298 = vst [vmem:[#allocation2 + $0x10] sm:$0xff] 0.0
          %299 = vst [vmem:[#allocation2 + $0x18] sm:$0xff] 0.0
          %300 = vst [vmem:[#allocation2 + $0x20] sm:$0xff] 0.0
          %301 = vst [vmem:[#allocation2 + $0x28] sm:$0xff] 0.0
          %302 = vst [vmem:[#allocation2 + $0x30] sm:$0xff] 0.0
          %303 = vst [vmem:[#allocation2 + $0x38] sm:$0xff] 0.0
          %304 = vst [vmem:[#allocation2 + $0x40] sm:$0xff] 0.0
          %305 = vst [vmem:[#allocation2 + $0x48] sm:$0xff] 0.0
          %306 = vst [vmem:[#allocation2 + $0x50] sm:$0xff] 0.0
          %307 = vst [vmem:[#allocation2 + $0x58] sm:$0xff] 0.0
          %308 = vst [vmem:[#allocation2 + $0x60] sm:$0xff] 0.0
          %309 = vst [vmem:[#allocation2 + $0x68] sm:$0xff] 0.0
          %310 = vst [vmem:[#allocation2 + $0x70] sm:$0xff] 0.0
          %311 = vst [vmem:[#allocation2 + $0x78] sm:$0xff] 0.0
          %312 = vst [vmem:[#allocation2 + $0x80] sm:$0xff] 0.0
          %313 = vst [vmem:[#allocation2 + $0x88] sm:$0xff] 0.0
          %314 = vst [vmem:[#allocation2 + $0x90] sm:$0xff] 0.0
          %315 = vst [vmem:[#allocation2 + $0x98] sm:$0xff] 0.0
          %316 = vst [vmem:[#allocation2 + $0xa0] sm:$0xff] 0.0
          %317 = vst [vmem:[#allocation2 + $0xa8] sm:$0xff] 0.0
          %318 = vst [vmem:[#allocation2 + $0xb0] sm:$0xff] 0.0
          %319 = vst [vmem:[#allocation2 + $0xb8] sm:$0xff] 0.0
          %320 = vst [vmem:[#allocation2 + $0xc0] sm:$0xff] 0.0
          %321 = vst [vmem:[#allocation2 + $0xc8] sm:$0xff] 0.0
          %322 = vst [vmem:[#allocation2 + $0xd0] sm:$0xff] 0.0
          %323 = vst [vmem:[#allocation2 + $0xd8] sm:$0xff] 0.0
          %324 = vst [vmem:[#allocation2 + $0xe0] sm:$0xff] 0.0
          %325 = vst [vmem:[#allocation2 + $0xe8] sm:$0xff] 0.0
          %326 = vst [vmem:[#allocation2 + $0xf0] sm:$0xff] 0.0
          %327 = vst [vmem:[#allocation2 + $0xf8] sm:$0xff] 0.0
        $region44: #{cnn_feed_forward.1} parent=39 // pred_fallthru
          _
        %v328 = vld [vmem:[%s275] sm:$0xf]
        %v329 = vld [vmem:[%s275 + $0x4] sm:$0xf]
        %v330 = vld [vmem:[%s275 + $0x8] sm:$0xf]
        %v331 = vld [vmem:[%s275 + $0xc] sm:$0xf]
        %v332 = vld [vmem:[%s275 + $0x10] sm:$0xf]
        %v333 = vld [vmem:[%s275 + $0x14] sm:$0xf]
        %v334 = vld [vmem:[%s275 + $0x18] sm:$0xf]
        %v335 = vld [vmem:[%s275 + $0x1c] sm:$0xf]
        %v336 = vld [vmem:[%s275 + $0x20] sm:$0xf]
        %v337 = vld [vmem:[%s275 + $0x24] sm:$0xf]
        %v338 = vld [vmem:[%s275 + $0x28] sm:$0xf]
        %v339 = vld [vmem:[%s275 + $0x2c] sm:$0xf]
        %v340 = vld [vmem:[%s275 + $0x30] sm:$0xf]
        %v341 = vld [vmem:[%s275 + $0x34] sm:$0xf]
        %v342 = vld [vmem:[%s275 + $0x38] sm:$0xf]
        %v343 = vld [vmem:[%s275 + $0x3c] sm:$0xf]
        %v344 = vld [vmem:[%s275 + $0x40] sm:$0xf]
        %v345 = vld [vmem:[%s275 + $0x44] sm:$0xf]
        %v346 = vld [vmem:[%s275 + $0x48] sm:$0xf]
        %v347 = vld [vmem:[%s275 + $0x4c] sm:$0xf]
        %v348 = vld [vmem:[%s275 + $0x50] sm:$0xf]
        %v349 = vld [vmem:[%s275 + $0x54] sm:$0xf]
        %v350 = vld [vmem:[%s275 + $0x58] sm:$0xf]
        %v351 = vld [vmem:[%s275 + $0x5c] sm:$0xf]
        %v352 = vld [vmem:[%s275 + $0x60] sm:$0xf]
        %v353 = vld [vmem:[%s275 + $0x64] sm:$0xf]
        %v354 = vld [vmem:[%s275 + $0x68] sm:$0xf]
        %v355 = vld [vmem:[%s275 + $0x6c] sm:$0xf]
        %v356 = vld [vmem:[%s275 + $0x70] sm:$0xf]
        %v357 = vld [vmem:[%s275 + $0x74] sm:$0xf]
        %v358 = vld [vmem:[%s275 + $0x78] sm:$0xf]
        %v359 = vld [vmem:[%s275 + $0x7c] sm:$0xf]
        %v360 = vld [vmem:[%s280] sm:$0xf]
        %v361 = vld [vmem:[%s280 + $0x4] sm:$0xf]
        %v362 = vld [vmem:[%s280 + $0x8] sm:$0xf]
        %v363 = vld [vmem:[%s280 + $0xc] sm:$0xf]
        %v364 = vld [vmem:[%s280 + $0x10] sm:$0xf]
        %v365 = vld [vmem:[%s280 + $0x14] sm:$0xf]
        %v366 = vld [vmem:[%s280 + $0x18] sm:$0xf]
        %v367 = vld [vmem:[%s280 + $0x1c] sm:$0xf]
        %v368 = vld [vmem:[%s280 + $0x20] sm:$0xf]
        %v369 = vld [vmem:[%s280 + $0x24] sm:$0xf]
        %v370 = vld [vmem:[%s280 + $0x28] sm:$0xf]
        %v371 = vld [vmem:[%s280 + $0x2c] sm:$0xf]
        %v372 = vld [vmem:[%s280 + $0x30] sm:$0xf]
        %v373 = vld [vmem:[%s280 + $0x34] sm:$0xf]
        %v374 = vld [vmem:[%s280 + $0x38] sm:$0xf]
        %v375 = vld [vmem:[%s280 + $0x3c] sm:$0xf]
        %v376 = vld [vmem:[%s283] sm:$0x1]
        %v378 = vlaneseq
        %v379 = vshrl.u32 %v378, 7
        %v380 = vsub.s32 0, %v379
        %v381 = vrot.slane %v376, %v380
        %v415 = vunpack.c.l.b16 %v328
        %v416 = vunpack.c.l.b16 %v329
        %v417 = vunpack.c.l.b16 %v330
        %v418 = vunpack.c.l.b16 %v331
        %v419 = vunpack.c.l.b16 %v332
        %v420 = vunpack.c.l.b16 %v333
        %v421 = vunpack.c.l.b16 %v334
        %v422 = vunpack.c.l.b16 %v335
        %v423 = vunpack.c.l.b16 %v336
        %v424 = vunpack.c.l.b16 %v337
        %v425 = vunpack.c.l.b16 %v338
        %v426 = vunpack.c.l.b16 %v339
        %v427 = vunpack.c.l.b16 %v340
        %v428 = vunpack.c.l.b16 %v341
        %v429 = vunpack.c.l.b16 %v342
        %v430 = vunpack.c.l.b16 %v343
        %v431 = vunpack.c.l.b16 %v344
        %v432 = vunpack.c.l.b16 %v345
        %v433 = vunpack.c.l.b16 %v346
        %v434 = vunpack.c.l.b16 %v347
        %v435 = vunpack.c.l.b16 %v348
        %v436 = vunpack.c.l.b16 %v349
        %v437 = vunpack.c.l.b16 %v350
        %v438 = vunpack.c.l.b16 %v351
        %v439 = vunpack.c.l.b16 %v352
        %v440 = vunpack.c.l.b16 %v353
        %v441 = vunpack.c.l.b16 %v354
        %v442 = vunpack.c.l.b16 %v355
        %v443 = vunpack.c.l.b16 %v356
        %v444 = vunpack.c.l.b16 %v357
        %v445 = vunpack.c.l.b16 %v358
        %v446 = vunpack.c.l.b16 %v359
        %v447 = vpack.c.b16 %v416, %v415
        %v448 = vpack.c.b16 %v418, %v417
        %v449 = vpack.c.b16 %v420, %v419
        %v450 = vpack.c.b16 %v422, %v421
        %v451 = vpack.c.b16 %v424, %v423
        %v452 = vpack.c.b16 %v426, %v425
        %v453 = vpack.c.b16 %v428, %v427
        %v454 = vpack.c.b16 %v430, %v429
        %v455 = vpack.c.b16 %v432, %v431
        %v456 = vpack.c.b16 %v434, %v433
        %v457 = vpack.c.b16 %v436, %v435
        %v458 = vpack.c.b16 %v438, %v437
        %v459 = vpack.c.b16 %v440, %v439
        %v460 = vpack.c.b16 %v442, %v441
        %v461 = vpack.c.b16 %v444, %v443
        %v462 = vpack.c.b16 %v446, %v445
        %v495 = vunpack.c.l.b16 %v360
        %v496 = vunpack.c.l.b16 %v361
        %v497 = vunpack.c.l.b16 %v362
        %v498 = vunpack.c.l.b16 %v363
        %v499 = vunpack.c.l.b16 %v364
        %v500 = vunpack.c.l.b16 %v365
        %v501 = vunpack.c.l.b16 %v366
        %v502 = vunpack.c.l.b16 %v367
        %v503 = vunpack.c.l.b16 %v368
        %v504 = vunpack.c.l.b16 %v369
        %v505 = vunpack.c.l.b16 %v370
        %v506 = vunpack.c.l.b16 %v371
        %v507 = vunpack.c.l.b16 %v372
        %v508 = vunpack.c.l.b16 %v373
        %v509 = vunpack.c.l.b16 %v374
        %v510 = vunpack.c.l.b16 %v375
        %v511 = vpack.c.b16 %v496, %v495
        %v512 = vpack.c.b16 %v498, %v497
        %v513 = vpack.c.b16 %v500, %v499
        %v514 = vpack.c.b16 %v502, %v501
        %v515 = vpack.c.b16 %v504, %v503
        %v516 = vpack.c.b16 %v506, %v505
        %v517 = vpack.c.b16 %v508, %v507
        %v518 = vpack.c.b16 %v510, %v509
        %527 = vmatprep.subr.bf16.mxu0 0
        %528 = vmatpush1.bf16.msra.mxu0 %v518
        %529 = vmatprep.subr.bf16.mxu0 0
        %530 = vmatpush1.bf16.msra.mxu0 %v517
        %531 = vmatprep.subr.bf16.mxu0 0
        %532 = vmatpush1.bf16.msra.mxu0 %v516
        %533 = vmatprep.subr.bf16.mxu0 0
        %534 = vmatpush1.bf16.msra.mxu0 %v515
        %535 = vmatprep.subr.bf16.mxu0 0
        %536 = vmatpush1.bf16.msra.mxu0 %v514
        %537 = vmatprep.subr.bf16.mxu0 0
        %538 = vmatpush1.bf16.msra.mxu0 %v513
        %539 = vmatprep.subr.bf16.mxu0 0
        %540 = vmatpush1.bf16.msra.mxu0 %v512
        %541 = vmatprep.subr.bf16.mxu0 0
        %542 = vmatpush1.bf16.msra.mxu0 %v511
        %543 = vmatprep.subr.bf16.mxu0 0
        %544 = vmatpush2.bf16.msra.mxu0 0
        %545 = vmatprep.subr.bf16.mxu0 0
        %546 = vmatpush2.bf16.msra.mxu0 0
        %547 = vmatprep.subr.bf16.mxu0 0
        %548 = vmatpush2.bf16.msra.mxu0 0
        %549 = vmatprep.subr.bf16.mxu0 0
        %550 = vmatpush2.bf16.msra.mxu0 0
        %551 = vmatprep.subr.bf16.mxu0 0
        %552 = vmatpush2.bf16.msra.mxu0 0
        %553 = vmatprep.subr.bf16.mxu0 0
        %554 = vmatpush2.bf16.msra.mxu0 0
        %555 = vmatprep.subr.bf16.mxu0 0
        %556 = vmatpush2.bf16.msra.mxu0 0
        %557 = vmatprep.subr.bf16.mxu0 0
        %558 = vmatpush2.bf16.msra.mxu0 0
        %559 = vmatprep.mubr.bf16.mxu0 0
        %560 = vmatmul.mubr.bf16.gmra.mxu0 %v447
        %v561 = vpop.f32.mrf.mxu0
        %v562 = vadd.f32 %v381, %v561
        %v563 = vpop.f32.mrf.mxu0
        %v564 = vpop.f32.mrf.mxu0
        %v565 = vadd.f32 %v381, %v564
        %v566 = vpop.f32.mrf.mxu0
        %567 = vmatprep.mubr.bf16.mxu0 0
        %568 = vmatmul.mubr.bf16.gmra.mxu0 %v448
        %v569 = vpop.f32.mrf.mxu0
        %v570 = vadd.f32 %v381, %v569
        %v571 = vpop.f32.mrf.mxu0
        %v572 = vpop.f32.mrf.mxu0
        %v573 = vadd.f32 %v381, %v572
        %v574 = vpop.f32.mrf.mxu0
        %575 = vmatprep.mubr.bf16.mxu0 0
        %576 = vmatmul.mubr.bf16.gmra.mxu0 %v449
        %v577 = vpop.f32.mrf.mxu0
        %v578 = vadd.f32 %v381, %v577
        %v579 = vpop.f32.mrf.mxu0
        %v580 = vpop.f32.mrf.mxu0
        %v581 = vadd.f32 %v381, %v580
        %v582 = vpop.f32.mrf.mxu0
        %583 = vmatprep.mubr.bf16.mxu0 0
        %584 = vmatmul.mubr.bf16.gmra.mxu0 %v450
        %v585 = vpop.f32.mrf.mxu0
        %v586 = vadd.f32 %v381, %v585
        %v587 = vpop.f32.mrf.mxu0
        %v588 = vpop.f32.mrf.mxu0
        %v589 = vadd.f32 %v381, %v588
        %v590 = vpop.f32.mrf.mxu0
        %591 = vmatprep.mubr.bf16.mxu0 0
        %592 = vmatmul.mubr.bf16.gmra.mxu0 %v451
        %v593 = vpop.f32.mrf.mxu0
        %v594 = vadd.f32 %v381, %v593
        %v595 = vpop.f32.mrf.mxu0
        %v596 = vpop.f32.mrf.mxu0
        %v597 = vadd.f32 %v381, %v596
        %v598 = vpop.f32.mrf.mxu0
        %599 = vmatprep.mubr.bf16.mxu0 0
        %600 = vmatmul.mubr.bf16.gmra.mxu0 %v452
        %v601 = vpop.f32.mrf.mxu0
        %v602 = vadd.f32 %v381, %v601
        %v603 = vpop.f32.mrf.mxu0
        %v604 = vpop.f32.mrf.mxu0
        %v605 = vadd.f32 %v381, %v604
        %v606 = vpop.f32.mrf.mxu0
        %607 = vmatprep.mubr.bf16.mxu0 0
        %608 = vmatmul.mubr.bf16.gmra.mxu0 %v453
        %v609 = vpop.f32.mrf.mxu0
        %v610 = vadd.f32 %v381, %v609
        %v611 = vpop.f32.mrf.mxu0
        %v612 = vpop.f32.mrf.mxu0
        %v613 = vadd.f32 %v381, %v612
        %v614 = vpop.f32.mrf.mxu0
        %615 = vmatprep.mubr.bf16.mxu0 0
        %616 = vmatmul.mubr.bf16.gmra.mxu0 %v454
        %v617 = vpop.f32.mrf.mxu0
        %v618 = vadd.f32 %v381, %v617
        %v619 = vpop.f32.mrf.mxu0
        %v620 = vpop.f32.mrf.mxu0
        %v621 = vadd.f32 %v381, %v620
        %v622 = vpop.f32.mrf.mxu0
        %623 = vmatprep.mubr.bf16.mxu0 0
        %624 = vmatmul.mubr.bf16.gmra.mxu0 %v455
        %v625 = vpop.f32.mrf.mxu0
        %v626 = vadd.f32 %v381, %v625
        %v627 = vpop.f32.mrf.mxu0
        %v628 = vpop.f32.mrf.mxu0
        %v629 = vadd.f32 %v381, %v628
        %v630 = vpop.f32.mrf.mxu0
        %631 = vmatprep.mubr.bf16.mxu0 0
        %632 = vmatmul.mubr.bf16.gmra.mxu0 %v456
        %v633 = vpop.f32.mrf.mxu0
        %v634 = vadd.f32 %v381, %v633
        %v635 = vpop.f32.mrf.mxu0
        %v636 = vpop.f32.mrf.mxu0
        %v637 = vadd.f32 %v381, %v636
        %v638 = vpop.f32.mrf.mxu0
        %639 = vmatprep.mubr.bf16.mxu0 0
        %640 = vmatmul.mubr.bf16.gmra.mxu0 %v457
        %v641 = vpop.f32.mrf.mxu0
        %v642 = vadd.f32 %v381, %v641
        %v643 = vpop.f32.mrf.mxu0
        %v644 = vpop.f32.mrf.mxu0
        %v645 = vadd.f32 %v381, %v644
        %v646 = vpop.f32.mrf.mxu0
        %647 = vmatprep.mubr.bf16.mxu0 0
        %648 = vmatmul.mubr.bf16.gmra.mxu0 %v458
        %v649 = vpop.f32.mrf.mxu0
        %v650 = vadd.f32 %v381, %v649
        %v651 = vpop.f32.mrf.mxu0
        %v652 = vpop.f32.mrf.mxu0
        %v653 = vadd.f32 %v381, %v652
        %v654 = vpop.f32.mrf.mxu0
        %655 = vmatprep.mubr.bf16.mxu0 0
        %656 = vmatmul.mubr.bf16.gmra.mxu0 %v459
        %v657 = vpop.f32.mrf.mxu0
        %v658 = vadd.f32 %v381, %v657
        %v659 = vpop.f32.mrf.mxu0
        %v660 = vpop.f32.mrf.mxu0
        %v661 = vadd.f32 %v381, %v660
        %v662 = vpop.f32.mrf.mxu0
        %663 = vmatprep.mubr.bf16.mxu0 0
        %664 = vmatmul.mubr.bf16.gmra.mxu0 %v460
        %v665 = vpop.f32.mrf.mxu0
        %v666 = vadd.f32 %v381, %v665
        %v667 = vpop.f32.mrf.mxu0
        %v668 = vpop.f32.mrf.mxu0
        %v669 = vadd.f32 %v381, %v668
        %v670 = vpop.f32.mrf.mxu0
        %671 = vmatprep.mubr.bf16.mxu0 0
        %672 = vmatmul.mubr.bf16.gmra.mxu0 %v461
        %v673 = vpop.f32.mrf.mxu0
        %v674 = vadd.f32 %v381, %v673
        %v675 = vpop.f32.mrf.mxu0
        %v676 = vpop.f32.mrf.mxu0
        %v677 = vadd.f32 %v381, %v676
        %v678 = vpop.f32.mrf.mxu0
        %679 = vmatprep.mubr.bf16.mxu0 0
        %680 = vmatmul.mubr.bf16.gmra.mxu0 %v462
        %v681 = vpop.f32.mrf.mxu0
        %v682 = vadd.f32 %v381, %v681
        %v683 = vpop.f32.mrf.mxu0
        %v684 = vpop.f32.mrf.mxu0
        %v685 = vadd.f32 %v381, %v684
        %v686 = vpop.f32.mrf.mxu0
        %687 = vdwg.mxu0
        %v688 = vmax.f32 %v562, 0.0
        %v689 = vmax.f32 %v565, 0.0
        %v690 = vmax.f32 %v570, 0.0
        %v691 = vmax.f32 %v573, 0.0
        %v692 = vmax.f32 %v578, 0.0
        %v693 = vmax.f32 %v581, 0.0
        %v694 = vmax.f32 %v586, 0.0
        %v695 = vmax.f32 %v589, 0.0
        %v696 = vmax.f32 %v594, 0.0
        %v697 = vmax.f32 %v597, 0.0
        %v698 = vmax.f32 %v602, 0.0
        %v699 = vmax.f32 %v605, 0.0
        %v700 = vmax.f32 %v610, 0.0
        %v701 = vmax.f32 %v613, 0.0
        %v702 = vmax.f32 %v618, 0.0
        %v703 = vmax.f32 %v621, 0.0
        %v704 = vmax.f32 %v626, 0.0
        %v705 = vmax.f32 %v629, 0.0
        %v706 = vmax.f32 %v634, 0.0
        %v707 = vmax.f32 %v637, 0.0
        %v708 = vmax.f32 %v642, 0.0
        %v709 = vmax.f32 %v645, 0.0
        %v710 = vmax.f32 %v650, 0.0
        %v711 = vmax.f32 %v653, 0.0
        %v712 = vmax.f32 %v658, 0.0
        %v713 = vmax.f32 %v661, 0.0
        %v714 = vmax.f32 %v666, 0.0
        %v715 = vmax.f32 %v669, 0.0
        %v716 = vmax.f32 %v674, 0.0
        %v717 = vmax.f32 %v677, 0.0
        %v718 = vmax.f32 %v682, 0.0
        %v719 = vmax.f32 %v685, 0.0
        %v720 = vld [vmem:[#allocation2] sm:$0xff]
        %v721 = vld [vmem:[#allocation2 + $0x8] sm:$0xff]
        %v722 = vld [vmem:[#allocation2 + $0x10] sm:$0xff]
        %v723 = vld [vmem:[#allocation2 + $0x18] sm:$0xff]
        %v724 = vld [vmem:[#allocation2 + $0x20] sm:$0xff]
        %v725 = vld [vmem:[#allocation2 + $0x28] sm:$0xff]
        %v726 = vld [vmem:[#allocation2 + $0x30] sm:$0xff]
        %v727 = vld [vmem:[#allocation2 + $0x38] sm:$0xff]
        %v728 = vld [vmem:[#allocation2 + $0x40] sm:$0xff]
        %v729 = vld [vmem:[#allocation2 + $0x48] sm:$0xff]
        %v730 = vld [vmem:[#allocation2 + $0x50] sm:$0xff]
        %v731 = vld [vmem:[#allocation2 + $0x58] sm:$0xff]
        %v732 = vld [vmem:[#allocation2 + $0x60] sm:$0xff]
        %v733 = vld [vmem:[#allocation2 + $0x68] sm:$0xff]
        %v734 = vld [vmem:[#allocation2 + $0x70] sm:$0xff]
        %v735 = vld [vmem:[#allocation2 + $0x78] sm:$0xff]
        %v736 = vld [vmem:[#allocation2 + $0x80] sm:$0xff]
        %v737 = vld [vmem:[#allocation2 + $0x88] sm:$0xff]
        %v738 = vld [vmem:[#allocation2 + $0x90] sm:$0xff]
        %v739 = vld [vmem:[#allocation2 + $0x98] sm:$0xff]
        %v740 = vld [vmem:[#allocation2 + $0xa0] sm:$0xff]
        %v741 = vld [vmem:[#allocation2 + $0xa8] sm:$0xff]
        %v742 = vld [vmem:[#allocation2 + $0xb0] sm:$0xff]
        %v743 = vld [vmem:[#allocation2 + $0xb8] sm:$0xff]
        %v744 = vld [vmem:[#allocation2 + $0xc0] sm:$0xff]
        %v745 = vld [vmem:[#allocation2 + $0xc8] sm:$0xff]
        %v746 = vld [vmem:[#allocation2 + $0xd0] sm:$0xff]
        %v747 = vld [vmem:[#allocation2 + $0xd8] sm:$0xff]
        %v748 = vld [vmem:[#allocation2 + $0xe0] sm:$0xff]
        %v749 = vld [vmem:[#allocation2 + $0xe8] sm:$0xff]
        %v750 = vld [vmem:[#allocation2 + $0xf0] sm:$0xff]
        %v751 = vld [vmem:[#allocation2 + $0xf8] sm:$0xff]
        %v752 = vpack.c.bf16 %v689, %v688
        %v753 = vpack.c.bf16 %v691, %v690
        %v754 = vpack.c.bf16 %v693, %v692
        %v755 = vpack.c.bf16 %v695, %v694
        %v756 = vpack.c.bf16 %v697, %v696
        %v757 = vpack.c.bf16 %v699, %v698
        %v758 = vpack.c.bf16 %v701, %v700
        %v759 = vpack.c.bf16 %v703, %v702
        %v760 = vpack.c.bf16 %v705, %v704
        %v761 = vpack.c.bf16 %v707, %v706
        %v762 = vpack.c.bf16 %v709, %v708
        %v763 = vpack.c.bf16 %v711, %v710
        %v764 = vpack.c.bf16 %v713, %v712
        %v765 = vpack.c.bf16 %v715, %v714
        %v766 = vpack.c.bf16 %v717, %v716
        %v767 = vpack.c.bf16 %v719, %v718
        %v768 = vld [vmem:[%s288] sm:$0xf]
        %v769 = vld [vmem:[%s288 + $0x4] sm:$0xf]
        %v770 = vld [vmem:[%s288 + $0x8] sm:$0xf]
        %v771 = vld [vmem:[%s288 + $0xc] sm:$0xf]
        %v772 = vld [vmem:[%s288 + $0x10] sm:$0xf]
        %v773 = vld [vmem:[%s288 + $0x14] sm:$0xf]
        %v774 = vld [vmem:[%s288 + $0x18] sm:$0xf]
        %v775 = vld [vmem:[%s288 + $0x1c] sm:$0xf]
        %v776 = vld [vmem:[%s288 + $0x20] sm:$0xf]
        %v777 = vld [vmem:[%s288 + $0x24] sm:$0xf]
        %v778 = vld [vmem:[%s288 + $0x28] sm:$0xf]
        %v779 = vld [vmem:[%s288 + $0x2c] sm:$0xf]
        %v780 = vld [vmem:[%s288 + $0x30] sm:$0xf]
        %v781 = vld [vmem:[%s288 + $0x34] sm:$0xf]
        %v782 = vld [vmem:[%s288 + $0x38] sm:$0xf]
        %v783 = vld [vmem:[%s288 + $0x3c] sm:$0xf]
        %v800 = vunpack.c.l.b16 %v768
        %v801 = vunpack.c.l.b16 %v769
        %v802 = vunpack.c.l.b16 %v770
        %v803 = vunpack.c.l.b16 %v771
        %v804 = vunpack.c.l.b16 %v772
        %v805 = vunpack.c.l.b16 %v773
        %v806 = vunpack.c.l.b16 %v774
        %v807 = vunpack.c.l.b16 %v775
        %v808 = vunpack.c.l.b16 %v776
        %v809 = vunpack.c.l.b16 %v777
        %v810 = vunpack.c.l.b16 %v778
        %v811 = vunpack.c.l.b16 %v779
        %v812 = vunpack.c.l.b16 %v780
        %v813 = vunpack.c.l.b16 %v781
        %v814 = vunpack.c.l.b16 %v782
        %v815 = vunpack.c.l.b16 %v783
        %v816 = vpack.c.b16 %v801, %v800
        %v817 = vpack.c.b16 %v803, %v802
        %v818 = vpack.c.b16 %v805, %v804
        %v819 = vpack.c.b16 %v807, %v806
        %v820 = vpack.c.b16 %v809, %v808
        %v821 = vpack.c.b16 %v811, %v810
        %v822 = vpack.c.b16 %v813, %v812
        %v823 = vpack.c.b16 %v815, %v814
        %832 = vmatprep.subr.bf16.mxu0 0
        %833 = vmatpush1.bf16.msra.mxu0 %v823
        %834 = vmatprep.subr.bf16.mxu0 0
        %835 = vmatpush1.bf16.msra.mxu0 %v822
        %836 = vmatprep.subr.bf16.mxu0 0
        %837 = vmatpush1.bf16.msra.mxu0 %v821
        %838 = vmatprep.subr.bf16.mxu0 0
        %839 = vmatpush1.bf16.msra.mxu0 %v820
        %840 = vmatprep.subr.bf16.mxu0 0
        %841 = vmatpush1.bf16.msra.mxu0 %v819
        %842 = vmatprep.subr.bf16.mxu0 0
        %843 = vmatpush1.bf16.msra.mxu0 %v818
        %844 = vmatprep.subr.bf16.mxu0 0
        %845 = vmatpush1.bf16.msra.mxu0 %v817
        %846 = vmatprep.subr.bf16.mxu0 0
        %847 = vmatpush1.bf16.msra.mxu0 %v816
        %848 = vmatprep.subr.bf16.mxu0 0
        %849 = vmatpush2.bf16.msra.mxu0 0
        %850 = vmatprep.subr.bf16.mxu0 0
        %851 = vmatpush2.bf16.msra.mxu0 0
        %852 = vmatprep.subr.bf16.mxu0 0
        %853 = vmatpush2.bf16.msra.mxu0 0
        %854 = vmatprep.subr.bf16.mxu0 0
        %855 = vmatpush2.bf16.msra.mxu0 0
        %856 = vmatprep.subr.bf16.mxu0 0
        %857 = vmatpush2.bf16.msra.mxu0 0
        %858 = vmatprep.subr.bf16.mxu0 0
        %859 = vmatpush2.bf16.msra.mxu0 0
        %860 = vmatprep.subr.bf16.mxu0 0
        %861 = vmatpush2.bf16.msra.mxu0 0
        %862 = vmatprep.subr.bf16.mxu0 0
        %863 = vmatpush2.bf16.msra.mxu0 0
        %864 = vmatprep.mubr.bf16.mxu0 0
        %865 = vmatmul.mubr.bf16.gmra.mxu0 %v752
        %v866 = vpop.f32.mrf.mxu0
        %v867 = vadd.f32 0.0, %v866
        %v868 = vpop.f32.mrf.mxu0
        %v869 = vpop.f32.mrf.mxu0
        %v870 = vadd.f32 0.0, %v869
        %v871 = vpop.f32.mrf.mxu0
        %872 = vmatprep.mubr.bf16.mxu0 0
        %873 = vmatmul.mubr.bf16.gmra.mxu0 %v753
        %v874 = vpop.f32.mrf.mxu0
        %v875 = vadd.f32 0.0, %v874
        %v876 = vpop.f32.mrf.mxu0
        %v877 = vpop.f32.mrf.mxu0
        %v878 = vadd.f32 0.0, %v877
        %v879 = vpop.f32.mrf.mxu0
        %880 = vmatprep.mubr.bf16.mxu0 0
        %881 = vmatmul.mubr.bf16.gmra.mxu0 %v754
        %v882 = vpop.f32.mrf.mxu0
        %v883 = vadd.f32 0.0, %v882
        %v884 = vpop.f32.mrf.mxu0
        %v885 = vpop.f32.mrf.mxu0
        %v886 = vadd.f32 0.0, %v885
        %v887 = vpop.f32.mrf.mxu0
        %888 = vmatprep.mubr.bf16.mxu0 0
        %889 = vmatmul.mubr.bf16.gmra.mxu0 %v755
        %v890 = vpop.f32.mrf.mxu0
        %v891 = vadd.f32 0.0, %v890
        %v892 = vpop.f32.mrf.mxu0
        %v893 = vpop.f32.mrf.mxu0
        %v894 = vadd.f32 0.0, %v893
        %v895 = vpop.f32.mrf.mxu0
        %896 = vmatprep.mubr.bf16.mxu0 0
        %897 = vmatmul.mubr.bf16.gmra.mxu0 %v756
        %v898 = vpop.f32.mrf.mxu0
        %v899 = vadd.f32 0.0, %v898
        %v900 = vpop.f32.mrf.mxu0
        %v901 = vpop.f32.mrf.mxu0
        %v902 = vadd.f32 0.0, %v901
        %v903 = vpop.f32.mrf.mxu0
        %904 = vmatprep.mubr.bf16.mxu0 0
        %905 = vmatmul.mubr.bf16.gmra.mxu0 %v757
        %v906 = vpop.f32.mrf.mxu0
        %v907 = vadd.f32 0.0, %v906
        %v908 = vpop.f32.mrf.mxu0
        %v909 = vpop.f32.mrf.mxu0
        %v910 = vadd.f32 0.0, %v909
        %v911 = vpop.f32.mrf.mxu0
        %912 = vmatprep.mubr.bf16.mxu0 0
        %913 = vmatmul.mubr.bf16.gmra.mxu0 %v758
        %v914 = vpop.f32.mrf.mxu0
        %v915 = vadd.f32 0.0, %v914
        %v916 = vpop.f32.mrf.mxu0
        %v917 = vpop.f32.mrf.mxu0
        %v918 = vadd.f32 0.0, %v917
        %v919 = vpop.f32.mrf.mxu0
        %920 = vmatprep.mubr.bf16.mxu0 0
        %921 = vmatmul.mubr.bf16.gmra.mxu0 %v759
        %v922 = vpop.f32.mrf.mxu0
        %v923 = vadd.f32 0.0, %v922
        %v924 = vpop.f32.mrf.mxu0
        %v925 = vpop.f32.mrf.mxu0
        %v926 = vadd.f32 0.0, %v925
        %v927 = vpop.f32.mrf.mxu0
        %928 = vmatprep.mubr.bf16.mxu0 0
        %929 = vmatmul.mubr.bf16.gmra.mxu0 %v760
        %v930 = vpop.f32.mrf.mxu0
        %v931 = vadd.f32 0.0, %v930
        %v932 = vpop.f32.mrf.mxu0
        %v933 = vpop.f32.mrf.mxu0
        %v934 = vadd.f32 0.0, %v933
        %v935 = vpop.f32.mrf.mxu0
        %936 = vmatprep.mubr.bf16.mxu0 0
        %937 = vmatmul.mubr.bf16.gmra.mxu0 %v761
        %v938 = vpop.f32.mrf.mxu0
        %v939 = vadd.f32 0.0, %v938
        %v940 = vpop.f32.mrf.mxu0
        %v941 = vpop.f32.mrf.mxu0
        %v942 = vadd.f32 0.0, %v941
        %v943 = vpop.f32.mrf.mxu0
        %944 = vmatprep.mubr.bf16.mxu0 0
        %945 = vmatmul.mubr.bf16.gmra.mxu0 %v762
        %v946 = vpop.f32.mrf.mxu0
        %v947 = vadd.f32 0.0, %v946
        %v948 = vpop.f32.mrf.mxu0
        %v949 = vpop.f32.mrf.mxu0
        %v950 = vadd.f32 0.0, %v949
        %v951 = vpop.f32.mrf.mxu0
        %952 = vmatprep.mubr.bf16.mxu0 0
        %953 = vmatmul.mubr.bf16.gmra.mxu0 %v763
        %v954 = vpop.f32.mrf.mxu0
        %v955 = vadd.f32 0.0, %v954
        %v956 = vpop.f32.mrf.mxu0
        %v957 = vpop.f32.mrf.mxu0
        %v958 = vadd.f32 0.0, %v957
        %v959 = vpop.f32.mrf.mxu0
        %960 = vmatprep.mubr.bf16.mxu0 0
        %961 = vmatmul.mubr.bf16.gmra.mxu0 %v764
        %v962 = vpop.f32.mrf.mxu0
        %v963 = vadd.f32 0.0, %v962
        %v964 = vpop.f32.mrf.mxu0
        %v965 = vpop.f32.mrf.mxu0
        %v966 = vadd.f32 0.0, %v965
        %v967 = vpop.f32.mrf.mxu0
        %968 = vmatprep.mubr.bf16.mxu0 0
        %969 = vmatmul.mubr.bf16.gmra.mxu0 %v765
        %v970 = vpop.f32.mrf.mxu0
        %v971 = vadd.f32 0.0, %v970
        %v972 = vpop.f32.mrf.mxu0
        %v973 = vpop.f32.mrf.mxu0
        %v974 = vadd.f32 0.0, %v973
        %v975 = vpop.f32.mrf.mxu0
        %976 = vmatprep.mubr.bf16.mxu0 0
        %977 = vmatmul.mubr.bf16.gmra.mxu0 %v766
        %v978 = vpop.f32.mrf.mxu0
        %v979 = vadd.f32 0.0, %v978
        %v980 = vpop.f32.mrf.mxu0
        %v981 = vpop.f32.mrf.mxu0
        %v982 = vadd.f32 0.0, %v981
        %v983 = vpop.f32.mrf.mxu0
        %984 = vmatprep.mubr.bf16.mxu0 0
        %985 = vmatmul.mubr.bf16.gmra.mxu0 %v767
        %v986 = vpop.f32.mrf.mxu0
        %v987 = vadd.f32 0.0, %v986
        %v988 = vpop.f32.mrf.mxu0
        %v989 = vpop.f32.mrf.mxu0
        %v990 = vadd.f32 0.0, %v989
        %v991 = vpop.f32.mrf.mxu0
        %992 = vdwg.mxu0
        %v993 = vadd.f32 %v720, %v867
        %v994 = vadd.f32 %v721, %v870
        %v995 = vadd.f32 %v722, %v875
        %v996 = vadd.f32 %v723, %v878
        %v997 = vadd.f32 %v724, %v883
        %v998 = vadd.f32 %v725, %v886
        %v999 = vadd.f32 %v726, %v891
        %v1000 = vadd.f32 %v727, %v894
        %v1001 = vadd.f32 %v728, %v899
        %v1002 = vadd.f32 %v729, %v902
        %v1003 = vadd.f32 %v730, %v907
        %v1004 = vadd.f32 %v731, %v910
        %v1005 = vadd.f32 %v732, %v915
        %v1006 = vadd.f32 %v733, %v918
        %v1007 = vadd.f32 %v734, %v923
        %v1008 = vadd.f32 %v735, %v926
        %v1009 = vadd.f32 %v736, %v931
        %v1010 = vadd.f32 %v737, %v934
        %v1011 = vadd.f32 %v738, %v939
        %v1012 = vadd.f32 %v739, %v942
        %v1013 = vadd.f32 %v740, %v947
        %v1014 = vadd.f32 %v741, %v950
        %v1015 = vadd.f32 %v742, %v955
        %v1016 = vadd.f32 %v743, %v958
        %v1017 = vadd.f32 %v744, %v963
        %v1018 = vadd.f32 %v745, %v966
        %v1019 = vadd.f32 %v746, %v971
        %v1020 = vadd.f32 %v747, %v974
        %v1021 = vadd.f32 %v748, %v979
        %v1022 = vadd.f32 %v749, %v982
        %v1023 = vadd.f32 %v750, %v987
        %v1024 = vadd.f32 %v751, %v990
        %1025 = vst [vmem:[#allocation2] sm:$0xff] %v993
        %1026 = vst [vmem:[#allocation2 + $0x8] sm:$0xff] %v994
        %1027 = vst [vmem:[#allocation2 + $0x10] sm:$0xff] %v995
        %1028 = vst [vmem:[#allocation2 + $0x18] sm:$0xff] %v996
        %1029 = vst [vmem:[#allocation2 + $0x20] sm:$0xff] %v997
        %1030 = vst [vmem:[#allocation2 + $0x28] sm:$0xff] %v998
        %1031 = vst [vmem:[#allocation2 + $0x30] sm:$0xff] %v999
        %1032 = vst [vmem:[#allocation2 + $0x38] sm:$0xff] %v1000
        %1033 = vst [vmem:[#allocation2 + $0x40] sm:$0xff] %v1001
        %1034 = vst [vmem:[#allocation2 + $0x48] sm:$0xff] %v1002
        %1035 = vst [vmem:[#allocation2 + $0x50] sm:$0xff] %v1003
        %1036 = vst [vmem:[#allocation2 + $0x58] sm:$0xff] %v1004
        %1037 = vst [vmem:[#allocation2 + $0x60] sm:$0xff] %v1005
        %1038 = vst [vmem:[#allocation2 + $0x68] sm:$0xff] %v1006
        %1039 = vst [vmem:[#allocation2 + $0x70] sm:$0xff] %v1007
        %1040 = vst [vmem:[#allocation2 + $0x78] sm:$0xff] %v1008
        %1041 = vst [vmem:[#allocation2 + $0x80] sm:$0xff] %v1009
        %1042 = vst [vmem:[#allocation2 + $0x88] sm:$0xff] %v1010
        %1043 = vst [vmem:[#allocation2 + $0x90] sm:$0xff] %v1011
        %1044 = vst [vmem:[#allocation2 + $0x98] sm:$0xff] %v1012
        %1045 = vst [vmem:[#allocation2 + $0xa0] sm:$0xff] %v1013
        %1046 = vst [vmem:[#allocation2 + $0xa8] sm:$0xff] %v1014
        %1047 = vst [vmem:[#allocation2 + $0xb0] sm:$0xff] %v1015
        %1048 = vst [vmem:[#allocation2 + $0xb8] sm:$0xff] %v1016
        %1049 = vst [vmem:[#allocation2 + $0xc0] sm:$0xff] %v1017
        %1050 = vst [vmem:[#allocation2 + $0xc8] sm:$0xff] %v1018
        %1051 = vst [vmem:[#allocation2 + $0xd0] sm:$0xff] %v1019
        %1052 = vst [vmem:[#allocation2 + $0xd8] sm:$0xff] %v1020
        %1053 = vst [vmem:[#allocation2 + $0xe0] sm:$0xff] %v1021
        %1054 = vst [vmem:[#allocation2 + $0xe8] sm:$0xff] %v1022
        %1055 = vst [vmem:[#allocation2 + $0xf0] sm:$0xff] %v1023
        %1056 = vst [vmem:[#allocation2 + $0xf8] sm:$0xff] %v1024
        // Predicated region
        $region45: #{cnn_feed_forward.1} parent=39 // pred_check
          %p1057 = pneg %p292
        $region46: #{cnn_feed_forward.1} parent=39 // pred_check_branch
          %1059 = sbr.rel (%p1057) target = $region48
        $region47: #{cnn_feed_forward.1} parent=39 // pred_region
          %v1060 = vld [vmem:[#allocation2] sm:$0xff]
          %v1061 = vld [vmem:[#allocation2 + $0x8] sm:$0xff]
          %v1062 = vld [vmem:[#allocation2 + $0x10] sm:$0xff]
          %v1063 = vld [vmem:[#allocation2 + $0x18] sm:$0xff]
          %v1064 = vld [vmem:[#allocation2 + $0x20] sm:$0xff]
          %v1065 = vld [vmem:[#allocation2 + $0x28] sm:$0xff]
          %v1066 = vld [vmem:[#allocation2 + $0x30] sm:$0xff]
          %v1067 = vld [vmem:[#allocation2 + $0x38] sm:$0xff]
          %v1068 = vld [vmem:[#allocation2 + $0x40] sm:$0xff]
          %v1069 = vld [vmem:[#allocation2 + $0x48] sm:$0xff]
          %v1070 = vld [vmem:[#allocation2 + $0x50] sm:$0xff]
          %v1071 = vld [vmem:[#allocation2 + $0x58] sm:$0xff]
          %v1072 = vld [vmem:[#allocation2 + $0x60] sm:$0xff]
          %v1073 = vld [vmem:[#allocation2 + $0x68] sm:$0xff]
          %v1074 = vld [vmem:[#allocation2 + $0x70] sm:$0xff]
          %v1075 = vld [vmem:[#allocation2 + $0x78] sm:$0xff]
          %v1076 = vld [vmem:[#allocation2 + $0x80] sm:$0xff]
          %v1077 = vld [vmem:[#allocation2 + $0x88] sm:$0xff]
          %v1078 = vld [vmem:[#allocation2 + $0x90] sm:$0xff]
          %v1079 = vld [vmem:[#allocation2 + $0x98] sm:$0xff]
          %v1080 = vld [vmem:[#allocation2 + $0xa0] sm:$0xff]
          %v1081 = vld [vmem:[#allocation2 + $0xa8] sm:$0xff]
          %v1082 = vld [vmem:[#allocation2 + $0xb0] sm:$0xff]
          %v1083 = vld [vmem:[#allocation2 + $0xb8] sm:$0xff]
          %v1084 = vld [vmem:[#allocation2 + $0xc0] sm:$0xff]
          %v1085 = vld [vmem:[#allocation2 + $0xc8] sm:$0xff]
          %v1086 = vld [vmem:[#allocation2 + $0xd0] sm:$0xff]
          %v1087 = vld [vmem:[#allocation2 + $0xd8] sm:$0xff]
          %v1088 = vld [vmem:[#allocation2 + $0xe0] sm:$0xff]
          %v1089 = vld [vmem:[#allocation2 + $0xe8] sm:$0xff]
          %v1090 = vld [vmem:[#allocation2 + $0xf0] sm:$0xff]
          %v1091 = vld [vmem:[#allocation2 + $0xf8] sm:$0xff]
          %v1092 = vld [vmem:[%s4] sm:$0x1]
          %v1094 = vlaneseq
          %v1095 = vshrl.u32 %v1094, 7
          %v1096 = vsub.s32 0, %v1095
          %v1097 = vrot.slane %v1092, %v1096
          %v1099 = vadd.f32 %v1060, %v1097
          %v1100 = vadd.f32 %v1061, %v1097
          %v1101 = vadd.f32 %v1062, %v1097
          %v1102 = vadd.f32 %v1063, %v1097
          %v1103 = vadd.f32 %v1064, %v1097
          %v1104 = vadd.f32 %v1065, %v1097
          %v1105 = vadd.f32 %v1066, %v1097
          %v1106 = vadd.f32 %v1067, %v1097
          %v1107 = vadd.f32 %v1068, %v1097
          %v1108 = vadd.f32 %v1069, %v1097
          %v1109 = vadd.f32 %v1070, %v1097
          %v1110 = vadd.f32 %v1071, %v1097
          %v1111 = vadd.f32 %v1072, %v1097
          %v1112 = vadd.f32 %v1073, %v1097
          %v1113 = vadd.f32 %v1074, %v1097
          %v1114 = vadd.f32 %v1075, %v1097
          %v1115 = vadd.f32 %v1076, %v1097
          %v1116 = vadd.f32 %v1077, %v1097
          %v1117 = vadd.f32 %v1078, %v1097
          %v1118 = vadd.f32 %v1079, %v1097
          %v1119 = vadd.f32 %v1080, %v1097
          %v1120 = vadd.f32 %v1081, %v1097
          %v1121 = vadd.f32 %v1082, %v1097
          %v1122 = vadd.f32 %v1083, %v1097
          %v1123 = vadd.f32 %v1084, %v1097
          %v1124 = vadd.f32 %v1085, %v1097
          %v1125 = vadd.f32 %v1086, %v1097
          %v1126 = vadd.f32 %v1087, %v1097
          %v1127 = vadd.f32 %v1088, %v1097
          %v1128 = vadd.f32 %v1089, %v1097
          %v1129 = vadd.f32 %v1090, %v1097
          %v1130 = vadd.f32 %v1091, %v1097
          %v1131 = vmax.f32 %v1099, 0.0
          %v1132 = vmax.f32 %v1100, 0.0
          %v1133 = vmax.f32 %v1101, 0.0
          %v1134 = vmax.f32 %v1102, 0.0
          %v1135 = vmax.f32 %v1103, 0.0
          %v1136 = vmax.f32 %v1104, 0.0
          %v1137 = vmax.f32 %v1105, 0.0
          %v1138 = vmax.f32 %v1106, 0.0
          %v1139 = vmax.f32 %v1107, 0.0
          %v1140 = vmax.f32 %v1108, 0.0
          %v1141 = vmax.f32 %v1109, 0.0
          %v1142 = vmax.f32 %v1110, 0.0
          %v1143 = vmax.f32 %v1111, 0.0
          %v1144 = vmax.f32 %v1112, 0.0
          %v1145 = vmax.f32 %v1113, 0.0
          %v1146 = vmax.f32 %v1114, 0.0
          %v1147 = vmax.f32 %v1115, 0.0
          %v1148 = vmax.f32 %v1116, 0.0
          %v1149 = vmax.f32 %v1117, 0.0
          %v1150 = vmax.f32 %v1118, 0.0
          %v1151 = vmax.f32 %v1119, 0.0
          %v1152 = vmax.f32 %v1120, 0.0
          %v1153 = vmax.f32 %v1121, 0.0
          %v1154 = vmax.f32 %v1122, 0.0
          %v1155 = vmax.f32 %v1123, 0.0
          %v1156 = vmax.f32 %v1124, 0.0
          %v1157 = vmax.f32 %v1125, 0.0
          %v1158 = vmax.f32 %v1126, 0.0
          %v1159 = vmax.f32 %v1127, 0.0
          %v1160 = vmax.f32 %v1128, 0.0
          %v1161 = vmax.f32 %v1129, 0.0
          %v1162 = vmax.f32 %v1130, 0.0
          %v1163 = vpack.c.bf16 %v1132, %v1131
          %v1164 = vpack.c.bf16 %v1134, %v1133
          %v1165 = vpack.c.bf16 %v1136, %v1135
          %v1166 = vpack.c.bf16 %v1138, %v1137
          %v1167 = vpack.c.bf16 %v1140, %v1139
          %v1168 = vpack.c.bf16 %v1142, %v1141
          %v1169 = vpack.c.bf16 %v1144, %v1143
          %v1170 = vpack.c.bf16 %v1146, %v1145
          %v1171 = vpack.c.bf16 %v1148, %v1147
          %v1172 = vpack.c.bf16 %v1150, %v1149
          %v1173 = vpack.c.bf16 %v1152, %v1151
          %v1174 = vpack.c.bf16 %v1154, %v1153
          %v1175 = vpack.c.bf16 %v1156, %v1155
          %v1176 = vpack.c.bf16 %v1158, %v1157
          %v1177 = vpack.c.bf16 %v1160, %v1159
          %v1178 = vpack.c.bf16 %v1162, %v1161
          %v1195 = vunpack.c.l.b16 %v1163
          %v1196 = vunpack.c.h.b16 %v1163
          %v1197 = vunpack.c.l.b16 %v1164
          %v1198 = vunpack.c.h.b16 %v1164
          %v1199 = vunpack.c.l.b16 %v1165
          %v1200 = vunpack.c.h.b16 %v1165
          %v1201 = vunpack.c.l.b16 %v1166
          %v1202 = vunpack.c.h.b16 %v1166
          %v1203 = vunpack.c.l.b16 %v1167
          %v1204 = vunpack.c.h.b16 %v1167
          %v1205 = vunpack.c.l.b16 %v1168
          %v1206 = vunpack.c.h.b16 %v1168
          %v1207 = vunpack.c.l.b16 %v1169
          %v1208 = vunpack.c.h.b16 %v1169
          %v1209 = vunpack.c.l.b16 %v1170
          %v1210 = vunpack.c.h.b16 %v1170
          %v1211 = vunpack.c.l.b16 %v1171
          %v1212 = vunpack.c.h.b16 %v1171
          %v1213 = vunpack.c.l.b16 %v1172
          %v1214 = vunpack.c.h.b16 %v1172
          %v1215 = vunpack.c.l.b16 %v1173
          %v1216 = vunpack.c.h.b16 %v1173
          %v1217 = vunpack.c.l.b16 %v1174
          %v1218 = vunpack.c.h.b16 %v1174
          %v1219 = vunpack.c.l.b16 %v1175
          %v1220 = vunpack.c.h.b16 %v1175
          %v1221 = vunpack.c.l.b16 %v1176
          %v1222 = vunpack.c.h.b16 %v1176
          %v1223 = vunpack.c.l.b16 %v1177
          %v1224 = vunpack.c.h.b16 %v1177
          %v1225 = vunpack.c.l.b16 %v1178
          %v1226 = vunpack.c.h.b16 %v1178
          %v1227 = vpack.c.b16 %v1195, %v1195
          %v1228 = vpack.c.b16 %v1196, %v1196
          %v1229 = vpack.c.b16 %v1197, %v1197
          %v1230 = vpack.c.b16 %v1198, %v1198
          %v1231 = vpack.c.b16 %v1199, %v1199
          %v1232 = vpack.c.b16 %v1200, %v1200
          %v1233 = vpack.c.b16 %v1201, %v1201
          %v1234 = vpack.c.b16 %v1202, %v1202
          %v1235 = vpack.c.b16 %v1203, %v1203
          %v1236 = vpack.c.b16 %v1204, %v1204
          %v1237 = vpack.c.b16 %v1205, %v1205
          %v1238 = vpack.c.b16 %v1206, %v1206
          %v1239 = vpack.c.b16 %v1207, %v1207
          %v1240 = vpack.c.b16 %v1208, %v1208
          %v1241 = vpack.c.b16 %v1209, %v1209
          %v1242 = vpack.c.b16 %v1210, %v1210
          %v1243 = vpack.c.b16 %v1211, %v1211
          %v1244 = vpack.c.b16 %v1212, %v1212
          %v1245 = vpack.c.b16 %v1213, %v1213
          %v1246 = vpack.c.b16 %v1214, %v1214
          %v1247 = vpack.c.b16 %v1215, %v1215
          %v1248 = vpack.c.b16 %v1216, %v1216
          %v1249 = vpack.c.b16 %v1217, %v1217
          %v1250 = vpack.c.b16 %v1218, %v1218
          %v1251 = vpack.c.b16 %v1219, %v1219
          %v1252 = vpack.c.b16 %v1220, %v1220
          %v1253 = vpack.c.b16 %v1221, %v1221
          %v1254 = vpack.c.b16 %v1222, %v1222
          %v1255 = vpack.c.b16 %v1223, %v1223
          %v1256 = vpack.c.b16 %v1224, %v1224
          %v1257 = vpack.c.b16 %v1225, %v1225
          %v1258 = vpack.c.b16 %v1226, %v1226
          %1291 = vst [vmem:[%s270] sm:$0xf] %v1227
          %1292 = vst [vmem:[%s270 + $0x4] sm:$0xf] %v1228
          %1293 = vst [vmem:[%s270 + $0x8] sm:$0xf] %v1229
          %1294 = vst [vmem:[%s270 + $0xc] sm:$0xf] %v1230
          %1295 = vst [vmem:[%s270 + $0x10] sm:$0xf] %v1231
          %1296 = vst [vmem:[%s270 + $0x14] sm:$0xf] %v1232
          %1297 = vst [vmem:[%s270 + $0x18] sm:$0xf] %v1233
          %1298 = vst [vmem:[%s270 + $0x1c] sm:$0xf] %v1234
          %1299 = vst [vmem:[%s270 + $0x20] sm:$0xf] %v1235
          %1300 = vst [vmem:[%s270 + $0x24] sm:$0xf] %v1236
          %1301 = vst [vmem:[%s270 + $0x28] sm:$0xf] %v1237
          %1302 = vst [vmem:[%s270 + $0x2c] sm:$0xf] %v1238
          %1303 = vst [vmem:[%s270 + $0x30] sm:$0xf] %v1239
          %1304 = vst [vmem:[%s270 + $0x34] sm:$0xf] %v1240
          %1305 = vst [vmem:[%s270 + $0x38] sm:$0xf] %v1241
          %1306 = vst [vmem:[%s270 + $0x3c] sm:$0xf] %v1242
          %1307 = vst [vmem:[%s270 + $0x40] sm:$0xf] %v1243
          %1308 = vst [vmem:[%s270 + $0x44] sm:$0xf] %v1244
          %1309 = vst [vmem:[%s270 + $0x48] sm:$0xf] %v1245
          %1310 = vst [vmem:[%s270 + $0x4c] sm:$0xf] %v1246
          %1311 = vst [vmem:[%s270 + $0x50] sm:$0xf] %v1247
          %1312 = vst [vmem:[%s270 + $0x54] sm:$0xf] %v1248
          %1313 = vst [vmem:[%s270 + $0x58] sm:$0xf] %v1249
          %1314 = vst [vmem:[%s270 + $0x5c] sm:$0xf] %v1250
          %1315 = vst [vmem:[%s270 + $0x60] sm:$0xf] %v1251
          %1316 = vst [vmem:[%s270 + $0x64] sm:$0xf] %v1252
          %1317 = vst [vmem:[%s270 + $0x68] sm:$0xf] %v1253
          %1318 = vst [vmem:[%s270 + $0x6c] sm:$0xf] %v1254
          %1319 = vst [vmem:[%s270 + $0x70] sm:$0xf] %v1255
          %1320 = vst [vmem:[%s270 + $0x74] sm:$0xf] %v1256
          %1321 = vst [vmem:[%s270 + $0x78] sm:$0xf] %v1257
          %1322 = vst [vmem:[%s270 + $0x7c] sm:$0xf] %v1258
        $region48: #{cnn_feed_forward.1} parent=39 // pred_fallthru
          _
        %s1323 = sand.u32 %s164, 1
        %s1324 = scalar_lea.sflag [#allocation4], %s1323
        %s1325 = sand.u32 %s164, 1
        %s1326 = smul.addr %s1325, 128
        %s1327 = scalar_lea.vmem [#allocation3], %s1326
        // Predicated region
        $region49: #{cnn_feed_forward.1} parent=39 // pred_check
          %p1328 = pneg %p174
        $region50: #{cnn_feed_forward.1} parent=39 // pred_check_branch
          %1330 = sbr.rel (%p1328) target = $region52
        $region51: #{cnn_feed_forward.1} parent=39 // pred_region
          %s1331 = smul.u32 32, %s23
          %s1333 = ssub.s32 2048, 2048
          %1334 = vsyncadd %s1324, %s1333
          %s1335 = smul.addr %s1331, 64
          %s1336 = scalar_lea.hbm %s5, %s1335
          %s1337 = sshll.u32 %s1327, 4
          %s1338 = int_to_ptr.vmem [resolvable:$true] %s1337
          %1343 = dma.vmem_to_hbm [thread:$0]  %s1338, 2048, %s1336, %s1324, 64, 64, 4
        $region52: #{cnn_feed_forward.1} parent=39 // pred_fallthru
          _
      $region40: #{cnn_feed_forward.1} parent=5 // pred_fallthru
        _
      %p1344 = scmp.le.s32.totalorder 2, %s14
      // Predicated region
      $region53: #{cnn_feed_forward.1} parent=5 // pred_check
        %p1345 = pneg %p1344
      $region54: #{cnn_feed_forward.1} parent=5 // pred_check_branch
        %1347 = sbr.rel (%p1345) target = $region56
      $region55: #{cnn_feed_forward.1} parent=5 // pred_region
        %s1348 = ssub.s32 %s14, 2
        // Predicated region
        $region57: #{cnn_feed_forward.1} parent=55 // pred_check
          %p1349 = pneg %p180
        $region58: #{cnn_feed_forward.1} parent=55 // pred_check_branch
          %1351 = sbr.rel (%p1349) target = $region60
        $region59: #{cnn_feed_forward.1} parent=55 // pred_region
          %s1352 = sand.u32 %s165, 1
          %s1353 = scalar_lea.sflag [#allocation4], %s1352
          %s1354 = sand.u32 %s165, 1
          %s1355 = smul.addr %s1354, 128
          %s1356 = scalar_lea.vmem [#allocation3], %s1355
          %1357 = dma.done %s1353, 2048
        $region60: #{cnn_feed_forward.1} parent=55 // pred_fallthru
          _
      $region56: #{cnn_feed_forward.1} parent=5 // pred_fallthru
        _
    $region6: #{cnn_feed_forward.1} parent=1 // loop_footer
      %s18 = sadd.s32 1, %s14
    $region7: #{cnn_feed_forward.1} parent=1 // loop_footer_branch
      %13 = sbr.rel target = $region3
    $region8: #{cnn_feed_forward.1} parent=1 // loop_exit
      _
    %1358 = vsyncpa [#allocation4], 1
    %s1359 = scalar_lea.sflag [#allocation4], 1
    %1360 = vsyncpa %s1359, 1

</llo_original>
